<compile_context>
chip_gen: v5e
topology: v5e:2x2
jax: 0.10.0
libtpu: 0.0.40
codegen_flags: <defaults>
</compile_context>

<pallas_src>
import jax
import jax.numpy as jnp
from jax.experimental import pallas as pl
from jax.experimental.pallas import tpu as pltpu

INPUT_DIM = 50
HIDDEN_DIM = 1500
OUTPUT_DIM = 50
HIDDEN_PAD = 1536          # 12 * 128: lane-dense hidden dimension
OUT_PAD = 128              # lane-dense output dimension (sliced back to 50 in wrapper)
HIDDEN_CHUNK = 256         # per-iteration hidden chunk (6 chunks) for matmul interleave
MAX_TB = 1024              # max batch tile (rows); working set stays ~5 MiB


def _round_up(x, m):
    return (x + m - 1) // m * m


def mlp_kernel(x_ref, w1_ref, b1_ref, w2_ref, b2_ref, o_ref):
    # In-kernel bf16 cast of the activations (free VPU work under the MXU).
    x = x_ref[...].astype(jnp.bfloat16)                       # (TB, 50)
    tb = x_ref.shape[0]
    acc = jnp.zeros((tb, OUT_PAD), jnp.float32)
    # Interleave fc1 / bias+ReLU / fc2 over hidden chunks so VPU work and the
    # h intermediate stay hidden under the MXU bursts.
    for c in range(HIDDEN_PAD // HIDDEN_CHUNK):
        off = c * HIDDEN_CHUNK
        h = jnp.dot(x, w1_ref[:, off:off + HIDDEN_CHUNK],
                    preferred_element_type=jnp.float32)        # (TB, 256) f32
        h = jnp.maximum(h + b1_ref[:, off:off + HIDDEN_CHUNK], 0.0)
        acc = acc + jnp.dot(h.astype(jnp.bfloat16),
                            w2_ref[off:off + HIDDEN_CHUNK, :],
                            preferred_element_type=jnp.float32)
    o_ref[...] = (acc + b2_ref[...]).astype(o_ref.dtype)


def prepare_params(w1, b1, w2, b2):
    """Pad hidden 1500->1536 and output 50->128 with zeros; weights -> bf16, biases f32.

    Invariant: b1's padded hidden units are zero so ReLU(0 + 0) = 0 there, and the
    corresponding rows of w2 are zero, so padding does not change the math. The padded
    output columns of w2/b2 are zero and are sliced away in the wrapper.
    """
    pad_h = HIDDEN_PAD - HIDDEN_DIM
    pad_o = OUT_PAD - OUTPUT_DIM
    w1p = jnp.pad(w1, ((0, 0), (0, pad_h))).astype(jnp.bfloat16)        # (50, 1536)
    b1p = jnp.pad(b1, ((0, 0), (0, pad_h))).astype(jnp.float32)         # (1, 1536)
    w2p = jnp.pad(w2, ((0, pad_h), (0, pad_o))).astype(jnp.bfloat16)    # (1536, 128)
    b2p = jnp.pad(b2, ((0, 0), (0, pad_o))).astype(jnp.float32)         # (1, 128)
    return w1p, b1p, w2p, b2p


def _choose_tiling(B):
    """Pick (n_tiles, TB) so that tiles are balanced, TB is sublane-aligned, and any
    batch > 16 produces at least two grid steps (keeps both v7x TensorCores busy)."""
    if B <= 16:
        n_tiles = 1
    else:
        n_tiles = max(pl.cdiv(B, MAX_TB), 2)
    TB = _round_up(pl.cdiv(B, n_tiles), 8)
    return n_tiles, TB


def simple_nn_forward(x, w1p, b1p, w2p, b2p):
    """x: (B, 50) float32. Prepared params from prepare_params(). Returns (B, 50) f32."""
    B = x.shape[0]
    n_tiles, TB = _choose_tiling(B)
    B_pad = n_tiles * TB

    x_p = x.astype(jnp.float32)
    if B_pad != B:
        # Keep explicit zero padding: Pallas does no VMEM bounds check, so the last
        # block must not read garbage rows.
        x_p = jnp.pad(x_p, ((0, B_pad - B), (0, 0)))

    out = pl.pallas_call(
        mlp_kernel,
        out_shape=jax.ShapeDtypeStruct((B_pad, OUT_PAD), jnp.float32),
        grid=(n_tiles,),
        in_specs=[
            pl.BlockSpec((TB, INPUT_DIM), lambda i: (i, 0)),            # x: tiled over batch
            pl.BlockSpec((INPUT_DIM, HIDDEN_PAD), lambda i: (0, 0)),    # w1: VMEM-resident
            pl.BlockSpec((1, HIDDEN_PAD), lambda i: (0, 0)),            # b1: VMEM-resident
            pl.BlockSpec((HIDDEN_PAD, OUT_PAD), lambda i: (0, 0)),      # w2: VMEM-resident
            pl.BlockSpec((1, OUT_PAD), lambda i: (0, 0)),               # b2: VMEM-resident
        ],
        out_specs=pl.BlockSpec((TB, OUT_PAD), lambda i: (i, 0)),        # lane-dense output
        compiler_params=pltpu.CompilerParams(
            # batch tiles are independent -> shard across both TCs on v7x
            dimension_semantics=("parallel",)
        ),
    )(x_p, w1p, b1p, w2p, b2p)

    return out[:B, :OUTPUT_DIM]


def init_params(key):
    """Deterministic init mimicking nn.Linear's U(-1/sqrt(fan_in), 1/sqrt(fan_in)).
    Stored directly in (in, out) layout == transpose of PyTorch's (out, in) weight."""
    k1, k2, k3, k4 = jax.random.split(key, 4)
    bound1 = 1.0 / jnp.sqrt(jnp.float32(INPUT_DIM))
    bound2 = 1.0 / jnp.sqrt(jnp.float32(HIDDEN_DIM))
    w1 = jax.random.uniform(k1, (INPUT_DIM, HIDDEN_DIM), jnp.float32, -bound1, bound1)
    b1 = jax.random.uniform(k2, (1, HIDDEN_DIM), jnp.float32, -bound1, bound1)
    w2 = jax.random.uniform(k3, (HIDDEN_DIM, OUTPUT_DIM), jnp.float32, -bound2, bound2)
    b2 = jax.random.uniform(k4, (1, OUTPUT_DIM), jnp.float32, -bound2, bound2)
    return w1, b1, w2, b2


def _reference(x, w1, b1, w2, b2):
    return jnp.maximum(x @ w1 + b1, 0.0) @ w2 + b2


if __name__ == "__main__":
    key = jax.random.PRNGKey(0)
    k_params, k_x1, k_x2 = jax.random.split(key, 3)
    w1, b1, w2, b2 = init_params(k_params)
    params = prepare_params(w1, b1, w2, b2)

    # Small batch: single grid step, sublane-aligned tile.
    batch = 4
    x = jax.random.normal(k_x1, (batch, INPUT_DIM), dtype=jnp.float32)
    out = jax.block_until_ready(simple_nn_forward(x, *params))
    ref = _reference(x, w1, b1, w2, b2)
    assert out.shape == (batch, OUTPUT_DIM)
    # bf16 weights + activations -> relaxed tolerance
    assert jnp.allclose(out, ref, atol=3e-2, rtol=3e-2)

    # Mid batch (>16): exercises the >=2-step grid and row-padding path.
    batch2 = 40
    x2 = jax.random.normal(k_x2, (batch2, INPUT_DIM), dtype=jnp.float32)
    out2 = jax.block_until_ready(simple_nn_forward(x2, *params))
    ref2 = _reference(x2, w1, b1, w2, b2)
    assert out2.shape == (batch2, OUTPUT_DIM)
    assert jnp.allclose(out2, ref2, atol=3e-2, rtol=3e-2)

    print("KERNEL_OK")
</pallas_src>

<mosaic_0001>
module attributes {stable_mosaic.version = 11 : i64} {
  func.func @mlp_kernel(%arg0: i32, %arg1: memref<8x50xf32, #tpu.memory_space<vmem>>, %arg2: memref<50x1536xbf16, #tpu.memory_space<vmem>>, %arg3: memref<1x1536xf32, #tpu.memory_space<vmem>>, %arg4: memref<1536x128xbf16, #tpu.memory_space<vmem>>, %arg5: memref<1x128xf32, #tpu.memory_space<vmem>>, %arg6: memref<8x128xf32, #tpu.memory_space<vmem>>) attributes {dimension_semantics = [#tpu.dimension_semantics<parallel>], iteration_bounds = array<i64: 1>, scalar_prefetch = 0 : i64, scratch_operands = 0 : i64, tpu.core_type = #tpu.core_type<tc>, window_params = [{transform_indices = @transform_0, window_bounds = array<i64: 8, 50>}, {pipeline_mode = #tpu.pipeline_mode<synchronous>, transform_indices = @transform_1, window_bounds = array<i64: 50, 1536>}, {pipeline_mode = #tpu.pipeline_mode<synchronous>, transform_indices = @transform_2, window_bounds = array<i64: 1, 1536>}, {pipeline_mode = #tpu.pipeline_mode<synchronous>, transform_indices = @transform_3, window_bounds = array<i64: 1536, 128>}, {pipeline_mode = #tpu.pipeline_mode<synchronous>, transform_indices = @transform_4, window_bounds = array<i64: 1, 128>}, {transform_indices = @transform_5, window_bounds = array<i64: 8, 128>}]} {
    %c0 = arith.constant 0 : index
    %c0_0 = arith.constant 0 : index
    %0 = vector.load %arg1[%c0, %c0_0] : memref<8x50xf32, #tpu.memory_space<vmem>>, vector<8x50xf32>
    %1 = arith.truncf %0 : vector<8x50xf32> to vector<8x50xbf16>
    %cst = arith.constant 0.000000e+00 : f32
    %2 = vector.broadcast %cst : f32 to vector<8x128xf32>
    %c0_1 = arith.constant 0 : index
    %c0_2 = arith.constant 0 : index
    %3 = vector.load %arg2[%c0_1, %c0_2] : memref<50x1536xbf16, #tpu.memory_space<vmem>>, vector<50x256xbf16>
    %cst_3 = arith.constant dense<0.000000e+00> : vector<8x256xf32>
    %4 = tpu.matmul %1, %3, %cst_3 {dimension_numbers = #tpu.dot_dimension_numbers<[1], [0], [0], [1], [0, 0, 1, 1], [], []>} : vector<8x50xbf16>, vector<50x256xbf16>, vector<8x256xf32> -> vector<8x256xf32>
    %c0_4 = arith.constant 0 : index
    %c0_5 = arith.constant 0 : index
    %5 = vector.load %arg3[%c0_4, %c0_5] : memref<1x1536xf32, #tpu.memory_space<vmem>>, vector<1x256xf32>
    %6 = vector.broadcast %5 : vector<1x256xf32> to vector<8x256xf32>
    %7 = arith.addf %4, %6 : vector<8x256xf32>
    %cst_6 = arith.constant 0.000000e+00 : f32
    %8 = vector.broadcast %cst_6 : f32 to vector<8x256xf32>
    %9 = arith.maximumf %7, %8 : vector<8x256xf32>
    %10 = arith.truncf %9 : vector<8x256xf32> to vector<8x256xbf16>
    %c0_7 = arith.constant 0 : index
    %c0_8 = arith.constant 0 : index
    %11 = vector.load %arg4[%c0_7, %c0_8] : memref<1536x128xbf16, #tpu.memory_space<vmem>>, vector<256x128xbf16>
    %cst_9 = arith.constant dense<0.000000e+00> : vector<8x128xf32>
    %12 = tpu.matmul %10, %11, %cst_9 {dimension_numbers = #tpu.dot_dimension_numbers<[1], [0], [0], [1], [0, 0, 1, 1], [], []>} : vector<8x256xbf16>, vector<256x128xbf16>, vector<8x128xf32> -> vector<8x128xf32>
    %13 = arith.addf %2, %12 : vector<8x128xf32>
    %c0_10 = arith.constant 0 : index
    %c256 = arith.constant 256 : index
    %14 = vector.load %arg2[%c0_10, %c256] : memref<50x1536xbf16, #tpu.memory_space<vmem>>, vector<50x256xbf16>
    %cst_11 = arith.constant dense<0.000000e+00> : vector<8x256xf32>
    %15 = tpu.matmul %1, %14, %cst_11 {dimension_numbers = #tpu.dot_dimension_numbers<[1], [0], [0], [1], [0, 0, 1, 1], [], []>} : vector<8x50xbf16>, vector<50x256xbf16>, vector<8x256xf32> -> vector<8x256xf32>
    %c0_12 = arith.constant 0 : index
    %c256_13 = arith.constant 256 : index
    %16 = vector.load %arg3[%c0_12, %c256_13] : memref<1x1536xf32, #tpu.memory_space<vmem>>, vector<1x256xf32>
    %17 = vector.broadcast %16 : vector<1x256xf32> to vector<8x256xf32>
    %18 = arith.addf %15, %17 : vector<8x256xf32>
    %cst_14 = arith.constant 0.000000e+00 : f32
    %19 = vector.broadcast %cst_14 : f32 to vector<8x256xf32>
    %20 = arith.maximumf %18, %19 : vector<8x256xf32>
    %21 = arith.truncf %20 : vector<8x256xf32> to vector<8x256xbf16>
    %c256_15 = arith.constant 256 : index
    %c0_16 = arith.constant 0 : index
    %22 = vector.load %arg4[%c256_15, %c0_16] : memref<1536x128xbf16, #tpu.memory_space<vmem>>, vector<256x128xbf16>
    %cst_17 = arith.constant dense<0.000000e+00> : vector<8x128xf32>
    %23 = tpu.matmul %21, %22, %cst_17 {dimension_numbers = #tpu.dot_dimension_numbers<[1], [0], [0], [1], [0, 0, 1, 1], [], []>} : vector<8x256xbf16>, vector<256x128xbf16>, vector<8x128xf32> -> vector<8x128xf32>
    %24 = arith.addf %13, %23 : vector<8x128xf32>
    %c0_18 = arith.constant 0 : index
    %c512 = arith.constant 512 : index
    %25 = vector.load %arg2[%c0_18, %c512] : memref<50x1536xbf16, #tpu.memory_space<vmem>>, vector<50x256xbf16>
    %cst_19 = arith.constant dense<0.000000e+00> : vector<8x256xf32>
    %26 = tpu.matmul %1, %25, %cst_19 {dimension_numbers = #tpu.dot_dimension_numbers<[1], [0], [0], [1], [0, 0, 1, 1], [], []>} : vector<8x50xbf16>, vector<50x256xbf16>, vector<8x256xf32> -> vector<8x256xf32>
    %c0_20 = arith.constant 0 : index
    %c512_21 = arith.constant 512 : index
    %27 = vector.load %arg3[%c0_20, %c512_21] : memref<1x1536xf32, #tpu.memory_space<vmem>>, vector<1x256xf32>
    %28 = vector.broadcast %27 : vector<1x256xf32> to vector<8x256xf32>
    %29 = arith.addf %26, %28 : vector<8x256xf32>
    %cst_22 = arith.constant 0.000000e+00 : f32
    %30 = vector.broadcast %cst_22 : f32 to vector<8x256xf32>
    %31 = arith.maximumf %29, %30 : vector<8x256xf32>
    %32 = arith.truncf %31 : vector<8x256xf32> to vector<8x256xbf16>
    %c512_23 = arith.constant 512 : index
    %c0_24 = arith.constant 0 : index
    %33 = vector.load %arg4[%c512_23, %c0_24] : memref<1536x128xbf16, #tpu.memory_space<vmem>>, vector<256x128xbf16>
    %cst_25 = arith.constant dense<0.000000e+00> : vector<8x128xf32>
    %34 = tpu.matmul %32, %33, %cst_25 {dimension_numbers = #tpu.dot_dimension_numbers<[1], [0], [0], [1], [0, 0, 1, 1], [], []>} : vector<8x256xbf16>, vector<256x128xbf16>, vector<8x128xf32> -> vector<8x128xf32>
    %35 = arith.addf %24, %34 : vector<8x128xf32>
    %c0_26 = arith.constant 0 : index
    %c768 = arith.constant 768 : index
    %36 = vector.load %arg2[%c0_26, %c768] : memref<50x1536xbf16, #tpu.memory_space<vmem>>, vector<50x256xbf16>
    %cst_27 = arith.constant dense<0.000000e+00> : vector<8x256xf32>
    %37 = tpu.matmul %1, %36, %cst_27 {dimension_numbers = #tpu.dot_dimension_numbers<[1], [0], [0], [1], [0, 0, 1, 1], [], []>} : vector<8x50xbf16>, vector<50x256xbf16>, vector<8x256xf32> -> vector<8x256xf32>
    %c0_28 = arith.constant 0 : index
    %c768_29 = arith.constant 768 : index
    %38 = vector.load %arg3[%c0_28, %c768_29] : memref<1x1536xf32, #tpu.memory_space<vmem>>, vector<1x256xf32>
    %39 = vector.broadcast %38 : vector<1x256xf32> to vector<8x256xf32>
    %40 = arith.addf %37, %39 : vector<8x256xf32>
    %cst_30 = arith.constant 0.000000e+00 : f32
    %41 = vector.broadcast %cst_30 : f32 to vector<8x256xf32>
    %42 = arith.maximumf %40, %41 : vector<8x256xf32>
    %43 = arith.truncf %42 : vector<8x256xf32> to vector<8x256xbf16>
    %c768_31 = arith.constant 768 : index
    %c0_32 = arith.constant 0 : index
    %44 = vector.load %arg4[%c768_31, %c0_32] : memref<1536x128xbf16, #tpu.memory_space<vmem>>, vector<256x128xbf16>
    %cst_33 = arith.constant dense<0.000000e+00> : vector<8x128xf32>
    %45 = tpu.matmul %43, %44, %cst_33 {dimension_numbers = #tpu.dot_dimension_numbers<[1], [0], [0], [1], [0, 0, 1, 1], [], []>} : vector<8x256xbf16>, vector<256x128xbf16>, vector<8x128xf32> -> vector<8x128xf32>
    %46 = arith.addf %35, %45 : vector<8x128xf32>
    %c0_34 = arith.constant 0 : index
    %c1024 = arith.constant 1024 : index
    %47 = vector.load %arg2[%c0_34, %c1024] : memref<50x1536xbf16, #tpu.memory_space<vmem>>, vector<50x256xbf16>
    %cst_35 = arith.constant dense<0.000000e+00> : vector<8x256xf32>
    %48 = tpu.matmul %1, %47, %cst_35 {dimension_numbers = #tpu.dot_dimension_numbers<[1], [0], [0], [1], [0, 0, 1, 1], [], []>} : vector<8x50xbf16>, vector<50x256xbf16>, vector<8x256xf32> -> vector<8x256xf32>
    %c0_36 = arith.constant 0 : index
    %c1024_37 = arith.constant 1024 : index
    %49 = vector.load %arg3[%c0_36, %c1024_37] : memref<1x1536xf32, #tpu.memory_space<vmem>>, vector<1x256xf32>
    %50 = vector.broadcast %49 : vector<1x256xf32> to vector<8x256xf32>
    %51 = arith.addf %48, %50 : vector<8x256xf32>
    %cst_38 = arith.constant 0.000000e+00 : f32
    %52 = vector.broadcast %cst_38 : f32 to vector<8x256xf32>
    %53 = arith.maximumf %51, %52 : vector<8x256xf32>
    %54 = arith.truncf %53 : vector<8x256xf32> to vector<8x256xbf16>
    %c1024_39 = arith.constant 1024 : index
    %c0_40 = arith.constant 0 : index
    %55 = vector.load %arg4[%c1024_39, %c0_40] : memref<1536x128xbf16, #tpu.memory_space<vmem>>, vector<256x128xbf16>
    %cst_41 = arith.constant dense<0.000000e+00> : vector<8x128xf32>
    %56 = tpu.matmul %54, %55, %cst_41 {dimension_numbers = #tpu.dot_dimension_numbers<[1], [0], [0], [1], [0, 0, 1, 1], [], []>} : vector<8x256xbf16>, vector<256x128xbf16>, vector<8x128xf32> -> vector<8x128xf32>
    %57 = arith.addf %46, %56 : vector<8x128xf32>
    %c0_42 = arith.constant 0 : index
    %c1280 = arith.constant 1280 : index
    %58 = vector.load %arg2[%c0_42, %c1280] : memref<50x1536xbf16, #tpu.memory_space<vmem>>, vector<50x256xbf16>
    %cst_43 = arith.constant dense<0.000000e+00> : vector<8x256xf32>
    %59 = tpu.matmul %1, %58, %cst_43 {dimension_numbers = #tpu.dot_dimension_numbers<[1], [0], [0], [1], [0, 0, 1, 1], [], []>} : vector<8x50xbf16>, vector<50x256xbf16>, vector<8x256xf32> -> vector<8x256xf32>
    %c0_44 = arith.constant 0 : index
    %c1280_45 = arith.constant 1280 : index
    %60 = vector.load %arg3[%c0_44, %c1280_45] : memref<1x1536xf32, #tpu.memory_space<vmem>>, vector<1x256xf32>
    %61 = vector.broadcast %60 : vector<1x256xf32> to vector<8x256xf32>
    %62 = arith.addf %59, %61 : vector<8x256xf32>
    %cst_46 = arith.constant 0.000000e+00 : f32
    %63 = vector.broadcast %cst_46 : f32 to vector<8x256xf32>
    %64 = arith.maximumf %62, %63 : vector<8x256xf32>
    %65 = arith.truncf %64 : vector<8x256xf32> to vector<8x256xbf16>
    %c1280_47 = arith.constant 1280 : index
    %c0_48 = arith.constant 0 : index
    %66 = vector.load %arg4[%c1280_47, %c0_48] : memref<1536x128xbf16, #tpu.memory_space<vmem>>, vector<256x128xbf16>
    %cst_49 = arith.constant dense<0.000000e+00> : vector<8x128xf32>
    %67 = tpu.matmul %65, %66, %cst_49 {dimension_numbers = #tpu.dot_dimension_numbers<[1], [0], [0], [1], [0, 0, 1, 1], [], []>} : vector<8x256xbf16>, vector<256x128xbf16>, vector<8x128xf32> -> vector<8x128xf32>
    %68 = arith.addf %57, %67 : vector<8x128xf32>
    %c0_50 = arith.constant 0 : index
    %c0_51 = arith.constant 0 : index
    %69 = vector.load %arg5[%c0_50, %c0_51] : memref<1x128xf32, #tpu.memory_space<vmem>>, vector<1x128xf32>
    %70 = vector.broadcast %69 : vector<1x128xf32> to vector<8x128xf32>
    %71 = arith.addf %68, %70 : vector<8x128xf32>
    %c0_52 = arith.constant 0 : index
    %c0_53 = arith.constant 0 : index
    %72 = vector.load %arg6[%c0_52, %c0_53] : memref<8x128xf32, #tpu.memory_space<vmem>>, vector<8x128xf32>
    tpu.vector_store %arg6[%c0_52, %c0_53], %71 {strides = array<i32>} : memref<8x128xf32, #tpu.memory_space<vmem>>, vector<8x128xf32>,
    return
  }
  func.func @transform_0(%arg0: i32) -> (i32, i32) {
    %c0_i32 = arith.constant 0 : i32
    %c0_i32_0 = arith.constant 0 : i32
    return %arg0, %c0_i32 : i32, i32
  }
  func.func @transform_1(%arg0: i32) -> (i32, i32) {
    %c0_i32 = arith.constant 0 : i32
    %c0_i32_0 = arith.constant 0 : i32
    %c0_i32_1 = arith.constant 0 : i32
    return %c0_i32, %c0_i32_0 : i32, i32
  }
  func.func @transform_2(%arg0: i32) -> (i32, i32) {
    %c0_i32 = arith.constant 0 : i32
    %c0_i32_0 = arith.constant 0 : i32
    %c0_i32_1 = arith.constant 0 : i32
    return %c0_i32, %c0_i32_0 : i32, i32
  }
  func.func @transform_3(%arg0: i32) -> (i32, i32) {
    %c0_i32 = arith.constant 0 : i32
    %c0_i32_0 = arith.constant 0 : i32
    %c0_i32_1 = arith.constant 0 : i32
    return %c0_i32, %c0_i32_0 : i32, i32
  }
  func.func @transform_4(%arg0: i32) -> (i32, i32) {
    %c0_i32 = arith.constant 0 : i32
    %c0_i32_0 = arith.constant 0 : i32
    %c0_i32_1 = arith.constant 0 : i32
    return %c0_i32, %c0_i32_0 : i32, i32
  }
  func.func @transform_5(%arg0: i32) -> (i32, i32) {
    %c0_i32 = arith.constant 0 : i32
    %c0_i32_0 = arith.constant 0 : i32
    return %arg0, %c0_i32 : i32, i32
  }
}

</mosaic_0001>

<llo_original>
// kernel: tpu_custom_call.1
$region0: #{tpu_custom_call.1}
  #allocation0 [shape = 'u32[]', space=smem, size = 0x4, offset = 0x4, fixed_abs, tag = 'smem constant byte address 0x4 - core index']
  #allocation1 [shape = 'u32[72,128]{1,0:T(1,128)}', space=vmem, size = 0x9000, scoped, tag = 'internal scratch']
  %s0 = inlined_call_operand.hbm [shape: f32[8,50], index: 0, kind: input, shape index: {}]
  %s1 = inlined_call_operand.hbm [shape: bf16[50,1536], index: 1, kind: input, shape index: {}]
  %s2 = inlined_call_operand.hbm [shape: f32[1,1536], index: 2, kind: input, shape index: {}]
  %s3 = inlined_call_operand.hbm [shape: bf16[1536,128], index: 3, kind: input, shape index: {}]
  %s4 = inlined_call_operand.vmem [shape: f32[1,128], index: 4, kind: input, shape index: {}]
  %s5 = inlined_call_operand.hbm [shape: f32[8,128], index: 5, kind: output, shape index: {}]
  %s6 = sld [smem:[#allocation0]]
  $region46: #{tpu_custom_call.1} parent=0
    _
  %s8 = ssub.s32 1, %s6
  %s9 = scalar_select 0, %s8, %s6
  $region1: #{tpu_custom_call.1} parent=0
    #allocation2 [shape = 'u8[4096]{0}', space=vmem, size = 0x1000, scoped, tag = 'input window, operand 0, single buffered']
    #allocation3 [shape = 's32[1]{0}', space=sflag, size = 0x4, scoped, tag = 'scoped memory for tpu_custom_call.1']
    #allocation4 [shape = 's32[1]{0}', space=sflag, size = 0x4, scoped, tag = 'scoped memory for tpu_custom_call.1']
    #allocation5 [shape = 'u8[172032]{0}', space=vmem, size = 0x2a000, scoped, tag = 'input window, operand 1, single buffered']
    #allocation6 [shape = 's32[1]{0}', space=sflag, size = 0x4, scoped, tag = 'scoped memory for tpu_custom_call.1']
    #allocation7 [shape = 'u8[6144]{0}', space=vmem, size = 0x1800, scoped, tag = 'input window, operand 2, single buffered']
    #allocation8 [shape = 'u8[393216]{0}', space=vmem, size = 0x60000, scoped, tag = 'input window, operand 3, single buffered']
    #allocation9 [shape = 's32[1]{0}', space=sflag, size = 0x4, scoped, tag = 'scoped memory for tpu_custom_call.1']
    #allocation10 [shape = 'u8[4096]{0}', space=vmem, size = 0x1000, scoped, tag = 'output window, operand 0, single buffered']
    %10 = vsyncpa [#allocation3], 0
    %11 = vsyncpa [#allocation6], 0
    %12 = vsyncpa [#allocation9], 0
    %13 = vsyncpa [#allocation4], 0
    // Predicated region
    $region2: #{tpu_custom_call.1} parent=1 // pred_check
      _
    $region3: #{tpu_custom_call.1} parent=1 // pred_check_branch
      %15 = sbr.rel (0) target = $region5
    $region4: #{tpu_custom_call.1} parent=1 // pred_region
      %17 = vsyncadd [#allocation3], 0
      %s19 = sshll.u32 %s0, 4
      %s20 = int_to_ptr.hbm [resolvable:$true] %s19
      %s21 = sshll.u32 [#allocation2], 4
      %s22 = int_to_ptr.vmem [resolvable:$true] %s21
      %24 = dma.hbm_to_vmem [thread:$0]  %s20, 128, %s22, [#allocation3]
    $region5: #{tpu_custom_call.1} parent=1 // pred_fallthru
      _
    // Predicated region
    $region6: #{tpu_custom_call.1} parent=1 // pred_check
      _
    $region7: #{tpu_custom_call.1} parent=1 // pred_check_branch
      %26 = sbr.rel (0) target = $region9
    $region8: #{tpu_custom_call.1} parent=1 // pred_region
      %28 = vsyncadd [#allocation6], 0
      %s29 = sshll.u32 %s1, 4
      %s30 = int_to_ptr.hbm [resolvable:$true] %s29
      %s31 = sshll.u32 [#allocation5], 4
      %s32 = int_to_ptr.vmem [resolvable:$true] %s31
      %37 = dma.hbm_to_vmem [thread:$0]  %s30, 5376, %s32, [#allocation6], 768, 768, 48
    $region9: #{tpu_custom_call.1} parent=1 // pred_fallthru
      _
    // Predicated region
    $region10: #{tpu_custom_call.1} parent=1 // pred_check
      _
    $region11: #{tpu_custom_call.1} parent=1 // pred_check_branch
      %39 = sbr.rel (0) target = $region13
    $region12: #{tpu_custom_call.1} parent=1 // pred_region
      %41 = vsyncadd [#allocation6], 0
      %s43 = sshll.u32 %s2, 4
      %s44 = int_to_ptr.hbm [resolvable:$true] %s43
      %s45 = sshll.u32 [#allocation7], 4
      %s46 = int_to_ptr.vmem [resolvable:$true] %s45
      %48 = dma.hbm_to_vmem [thread:$0]  %s44, 192, %s46, [#allocation6]
    $region13: #{tpu_custom_call.1} parent=1 // pred_fallthru
      _
    // Predicated region
    $region14: #{tpu_custom_call.1} parent=1 // pred_check
      _
    $region15: #{tpu_custom_call.1} parent=1 // pred_check_branch
      %50 = sbr.rel (0) target = $region17
    $region16: #{tpu_custom_call.1} parent=1 // pred_region
      %52 = vsyncadd [#allocation9], 0
      %s53 = sshll.u32 %s3, 4
      %s54 = int_to_ptr.hbm [resolvable:$true] %s53
      %s55 = sshll.u32 [#allocation8], 4
      %s56 = int_to_ptr.vmem [resolvable:$true] %s55
      %61 = dma.hbm_to_vmem [thread:$0]  %s54, 12288, %s56, [#allocation9], 64, 64, 4
    $region17: #{tpu_custom_call.1} parent=1 // pred_fallthru
      _
    // Predicated region
    $region18: #{tpu_custom_call.1} parent=1 // pred_check
      _
    $region19: #{tpu_custom_call.1} parent=1 // pred_check_branch
      %63 = sbr.rel (0) target = $region21
    $region20: #{tpu_custom_call.1} parent=1 // pred_region
      _
    $region21: #{tpu_custom_call.1} parent=1 // pred_fallthru
      _
    // Predicated region
    $region22: #{tpu_custom_call.1} parent=1 // pred_check
      _
    $region23: #{tpu_custom_call.1} parent=1 // pred_check_branch
      %65 = sbr.rel (0) target = $region25
    $region24: #{tpu_custom_call.1} parent=1 // pred_region
      %67 = dma.done [#allocation3], 128
    $region25: #{tpu_custom_call.1} parent=1 // pred_fallthru
      _
    // Predicated region
    $region26: #{tpu_custom_call.1} parent=1 // pred_check
      _
    $region27: #{tpu_custom_call.1} parent=1 // pred_check_branch
      %69 = sbr.rel (0) target = $region29
    $region28: #{tpu_custom_call.1} parent=1 // pred_region
      %71 = dma.done [#allocation6], 5376
    $region29: #{tpu_custom_call.1} parent=1 // pred_fallthru
      _
    // Predicated region
    $region30: #{tpu_custom_call.1} parent=1 // pred_check
      _
    $region31: #{tpu_custom_call.1} parent=1 // pred_check_branch
      %73 = sbr.rel (0) target = $region33
    $region32: #{tpu_custom_call.1} parent=1 // pred_region
      %75 = dma.done [#allocation6], 192
    $region33: #{tpu_custom_call.1} parent=1 // pred_fallthru
      _
    // Predicated region
    $region34: #{tpu_custom_call.1} parent=1 // pred_check
      _
    $region35: #{tpu_custom_call.1} parent=1 // pred_check_branch
      %77 = sbr.rel (0) target = $region37
    $region36: #{tpu_custom_call.1} parent=1 // pred_region
      %79 = dma.done [#allocation9], 12288
    $region37: #{tpu_custom_call.1} parent=1 // pred_fallthru
      _
    %v81 = vld [vmem:[#allocation2] sm:$0xff]
    %v82 = vpack.c.bf16 %v81, %v81
    %v83 = vld [vmem:[#allocation5] sm:$0xff]
    %v84 = vld [vmem:[#allocation5 + $0x30] sm:$0xff]
    %v85 = vld [vmem:[#allocation5 + $0x60] sm:$0xff]
    %v86 = vld [vmem:[#allocation5 + $0x90] sm:$0xff]
    %v87 = vld [vmem:[#allocation5 + $0xc0] sm:$0xff]
    %v88 = vld [vmem:[#allocation5 + $0xf0] sm:$0xff]
    %v89 = vld [vmem:[#allocation5 + $0x120] sm:$0x11]
    %v90 = vld [vmem:[#allocation7] sm:$0x3]
    %v92 = vperm.slane %v90, 0
    %v93 = vperm.slane %v90, 1
    %v103 = vunpack.c.l.b16 %v83
    %v104 = vunpack.c.h.b16 %v83
    %v105 = vunpack.c.l.b16 %v84
    %v106 = vunpack.c.h.b16 %v84
    %v107 = vunpack.c.l.b16 %v85
    %v108 = vunpack.c.h.b16 %v85
    %v109 = vunpack.c.l.b16 %v86
    %v110 = vunpack.c.h.b16 %v86
    %v111 = vunpack.c.l.b16 %v87
    %v112 = vunpack.c.h.b16 %v87
    %v113 = vunpack.c.l.b16 %v88
    %v114 = vunpack.c.h.b16 %v88
    %v115 = vunpack.c.l.b16 %v89
    %v116 = vunpack.c.h.b16 %v89
    %v117 = vpack.c.b16 %v105, %v103
    %v118 = vpack.c.b16 %v106, %v104
    %v119 = vpack.c.b16 %v109, %v107
    %v120 = vpack.c.b16 %v110, %v108
    %v121 = vpack.c.b16 %v113, %v111
    %v122 = vpack.c.b16 %v114, %v112
    %v123 = vpack.c.b16 %v115, %v115
    %v124 = vpack.c.b16 %v116, %v116
    %vm131 = vcmask 408576
    %v133 = vsel %vm131, %v82, 0
    %vm135 = vcmask 1040384
    %v137 = vsel %vm135, %v123, 0
    %v140 = vsel %vm135, %v124, 0
    %142 = vmatpush.bf16.msra.mxu0 0
    %143 = vmatpush.bf16.msra.mxu0 0
    %144 = vmatpush.bf16.msra.mxu0 0
    %145 = vmatpush.bf16.msra.mxu0 0
    %146 = vmatpush.bf16.msra.mxu0 %v137
    %147 = vmatpush.bf16.msra.mxu0 %v121
    %148 = vmatpush.bf16.msra.mxu0 %v119
    %149 = vmatpush.bf16.msra.mxu0 %v117
    %150 = vmatmul.bf16.gmra.mxu0 %v133
    %v151 = vpop.f32.mrf.mxu0
    %v152 = vadd.f32 %v92, %v151
    %v153 = vpop.f32.mrf.mxu0
    %154 = vdwg.mxu0
    %155 = vmatpush.bf16.msra.mxu0 0
    %156 = vmatpush.bf16.msra.mxu0 0
    %157 = vmatpush.bf16.msra.mxu0 0
    %158 = vmatpush.bf16.msra.mxu0 0
    %159 = vmatpush.bf16.msra.mxu0 %v140
    %160 = vmatpush.bf16.msra.mxu0 %v122
    %161 = vmatpush.bf16.msra.mxu0 %v120
    %162 = vmatpush.bf16.msra.mxu0 %v118
    %163 = vmatmul.bf16.gmra.mxu0 %v133
    %v164 = vpop.f32.mrf.mxu0
    %v165 = vadd.f32 %v93, %v164
    %v166 = vpop.f32.mrf.mxu0
    %167 = vdwg.mxu0
    %v168 = vmax.f32 %v152, 0.0
    %v169 = vmax.f32 %v165, 0.0
    %v170 = vpack.c.bf16 %v168, %v168
    %v171 = vpack.c.bf16 %v169, %v169
    %v172 = vld [vmem:[#allocation8] sm:$0xf]
    %v173 = vld [vmem:[#allocation8 + $0x4] sm:$0xf]
    %v174 = vld [vmem:[#allocation8 + $0x8] sm:$0xf]
    %v175 = vld [vmem:[#allocation8 + $0xc] sm:$0xf]
    %v176 = vld [vmem:[#allocation8 + $0x10] sm:$0xf]
    %v177 = vld [vmem:[#allocation8 + $0x14] sm:$0xf]
    %v178 = vld [vmem:[#allocation8 + $0x18] sm:$0xf]
    %v179 = vld [vmem:[#allocation8 + $0x1c] sm:$0xf]
    %v180 = vld [vmem:[#allocation8 + $0x20] sm:$0xf]
    %v181 = vld [vmem:[#allocation8 + $0x24] sm:$0xf]
    %v182 = vld [vmem:[#allocation8 + $0x28] sm:$0xf]
    %v183 = vld [vmem:[#allocation8 + $0x2c] sm:$0xf]
    %v184 = vld [vmem:[#allocation8 + $0x30] sm:$0xf]
    %v185 = vld [vmem:[#allocation8 + $0x34] sm:$0xf]
    %v186 = vld [vmem:[#allocation8 + $0x38] sm:$0xf]
    %v187 = vld [vmem:[#allocation8 + $0x3c] sm:$0xf]
    %v188 = vld [vmem:[#allocation8 + $0x40] sm:$0xf]
    %v189 = vld [vmem:[#allocation8 + $0x44] sm:$0xf]
    %v190 = vld [vmem:[#allocation8 + $0x48] sm:$0xf]
    %v191 = vld [vmem:[#allocation8 + $0x4c] sm:$0xf]
    %v192 = vld [vmem:[#allocation8 + $0x50] sm:$0xf]
    %v193 = vld [vmem:[#allocation8 + $0x54] sm:$0xf]
    %v194 = vld [vmem:[#allocation8 + $0x58] sm:$0xf]
    %v195 = vld [vmem:[#allocation8 + $0x5c] sm:$0xf]
    %v196 = vld [vmem:[#allocation8 + $0x60] sm:$0xf]
    %v197 = vld [vmem:[#allocation8 + $0x64] sm:$0xf]
    %v198 = vld [vmem:[#allocation8 + $0x68] sm:$0xf]
    %v199 = vld [vmem:[#allocation8 + $0x6c] sm:$0xf]
    %v200 = vld [vmem:[#allocation8 + $0x70] sm:$0xf]
    %v201 = vld [vmem:[#allocation8 + $0x74] sm:$0xf]
    %v202 = vld [vmem:[#allocation8 + $0x78] sm:$0xf]
    %v203 = vld [vmem:[#allocation8 + $0x7c] sm:$0xf]
    %v204 = vld [vmem:[#allocation5 + $0x8] sm:$0xff]
    %v205 = vld [vmem:[#allocation5 + $0x38] sm:$0xff]
    %v206 = vld [vmem:[#allocation5 + $0x68] sm:$0xff]
    %v207 = vld [vmem:[#allocation5 + $0x98] sm:$0xff]
    %v208 = vld [vmem:[#allocation5 + $0xc8] sm:$0xff]
    %v209 = vld [vmem:[#allocation5 + $0xf8] sm:$0xff]
    %v210 = vld [vmem:[#allocation5 + $0x128] sm:$0x11]
    %v211 = vld [vmem:[#allocation7 + $0x2] sm:$0x3]
    %v213 = vperm.slane %v211, 0
    %v214 = vperm.slane %v211, 1
    %v224 = vunpack.c.l.b16 %v204
    %v225 = vunpack.c.h.b16 %v204
    %v226 = vunpack.c.l.b16 %v205
    %v227 = vunpack.c.h.b16 %v205
    %v228 = vunpack.c.l.b16 %v206
    %v229 = vunpack.c.h.b16 %v206
    %v230 = vunpack.c.l.b16 %v207
    %v231 = vunpack.c.h.b16 %v207
    %v232 = vunpack.c.l.b16 %v208
    %v233 = vunpack.c.h.b16 %v208
    %v234 = vunpack.c.l.b16 %v209
    %v235 = vunpack.c.h.b16 %v209
    %v236 = vunpack.c.l.b16 %v210
    %v237 = vunpack.c.h.b16 %v210
    %v238 = vpack.c.b16 %v226, %v224
    %v239 = vpack.c.b16 %v227, %v225
    %v240 = vpack.c.b16 %v230, %v228
    %v241 = vpack.c.b16 %v231, %v229
    %v242 = vpack.c.b16 %v234, %v232
    %v243 = vpack.c.b16 %v235, %v233
    %v244 = vpack.c.b16 %v236, %v236
    %v245 = vpack.c.b16 %v237, %v237
    %v253 = vsel %vm135, %v244, 0
    %v256 = vsel %vm135, %v245, 0
    %258 = vmatpush.bf16.msra.mxu0 0
    %259 = vmatpush.bf16.msra.mxu0 0
    %260 = vmatpush.bf16.msra.mxu0 0
    %261 = vmatpush.bf16.msra.mxu0 0
    %262 = vmatpush.bf16.msra.mxu0 %v253
    %263 = vmatpush.bf16.msra.mxu0 %v242
    %264 = vmatpush.bf16.msra.mxu0 %v240
    %265 = vmatpush.bf16.msra.mxu0 %v238
    %266 = vmatmul.bf16.gmra.mxu0 %v133
    %v267 = vpop.f32.mrf.mxu0
    %v268 = vadd.f32 %v213, %v267
    %v269 = vpop.f32.mrf.mxu0
    %270 = vdwg.mxu0
    %271 = vmatpush.bf16.msra.mxu0 0
    %272 = vmatpush.bf16.msra.mxu0 0
    %273 = vmatpush.bf16.msra.mxu0 0
    %274 = vmatpush.bf16.msra.mxu0 0
    %275 = vmatpush.bf16.msra.mxu0 %v256
    %276 = vmatpush.bf16.msra.mxu0 %v243
    %277 = vmatpush.bf16.msra.mxu0 %v241
    %278 = vmatpush.bf16.msra.mxu0 %v239
    %279 = vmatmul.bf16.gmra.mxu0 %v133
    %v280 = vpop.f32.mrf.mxu0
    %v281 = vadd.f32 %v214, %v280
    %v282 = vpop.f32.mrf.mxu0
    %283 = vdwg.mxu0
    %v284 = vmax.f32 %v268, 0.0
    %v285 = vmax.f32 %v281, 0.0
    %v286 = vpack.c.bf16 %v284, %v284
    %v287 = vpack.c.bf16 %v285, %v285
    %v288 = vld [vmem:[#allocation8 + $0x80] sm:$0xf]
    %v289 = vld [vmem:[#allocation8 + $0x84] sm:$0xf]
    %v290 = vld [vmem:[#allocation8 + $0x88] sm:$0xf]
    %v291 = vld [vmem:[#allocation8 + $0x8c] sm:$0xf]
    %v292 = vld [vmem:[#allocation8 + $0x90] sm:$0xf]
    %v293 = vld [vmem:[#allocation8 + $0x94] sm:$0xf]
    %v294 = vld [vmem:[#allocation8 + $0x98] sm:$0xf]
    %v295 = vld [vmem:[#allocation8 + $0x9c] sm:$0xf]
    %v296 = vld [vmem:[#allocation8 + $0xa0] sm:$0xf]
    %v297 = vld [vmem:[#allocation8 + $0xa4] sm:$0xf]
    %v298 = vld [vmem:[#allocation8 + $0xa8] sm:$0xf]
    %v299 = vld [vmem:[#allocation8 + $0xac] sm:$0xf]
    %v300 = vld [vmem:[#allocation8 + $0xb0] sm:$0xf]
    %v301 = vld [vmem:[#allocation8 + $0xb4] sm:$0xf]
    %v302 = vld [vmem:[#allocation8 + $0xb8] sm:$0xf]
    %v303 = vld [vmem:[#allocation8 + $0xbc] sm:$0xf]
    %v304 = vld [vmem:[#allocation8 + $0xc0] sm:$0xf]
    %v305 = vld [vmem:[#allocation8 + $0xc4] sm:$0xf]
    %v306 = vld [vmem:[#allocation8 + $0xc8] sm:$0xf]
    %v307 = vld [vmem:[#allocation8 + $0xcc] sm:$0xf]
    %v308 = vld [vmem:[#allocation8 + $0xd0] sm:$0xf]
    %v309 = vld [vmem:[#allocation8 + $0xd4] sm:$0xf]
    %v310 = vld [vmem:[#allocation8 + $0xd8] sm:$0xf]
    %v311 = vld [vmem:[#allocation8 + $0xdc] sm:$0xf]
    %v312 = vld [vmem:[#allocation8 + $0xe0] sm:$0xf]
    %v313 = vld [vmem:[#allocation8 + $0xe4] sm:$0xf]
    %v314 = vld [vmem:[#allocation8 + $0xe8] sm:$0xf]
    %v315 = vld [vmem:[#allocation8 + $0xec] sm:$0xf]
    %v316 = vld [vmem:[#allocation8 + $0xf0] sm:$0xf]
    %v317 = vld [vmem:[#allocation8 + $0xf4] sm:$0xf]
    %v318 = vld [vmem:[#allocation8 + $0xf8] sm:$0xf]
    %v319 = vld [vmem:[#allocation8 + $0xfc] sm:$0xf]
    %v352 = vunpack.c.l.b16 %v288
    %v353 = vunpack.c.l.b16 %v289
    %v354 = vunpack.c.l.b16 %v290
    %v355 = vunpack.c.l.b16 %v291
    %v356 = vunpack.c.l.b16 %v292
    %v357 = vunpack.c.l.b16 %v293
    %v358 = vunpack.c.l.b16 %v294
    %v359 = vunpack.c.l.b16 %v295
    %v360 = vunpack.c.l.b16 %v296
    %v361 = vunpack.c.l.b16 %v297
    %v362 = vunpack.c.l.b16 %v298
    %v363 = vunpack.c.l.b16 %v299
    %v364 = vunpack.c.l.b16 %v300
    %v365 = vunpack.c.l.b16 %v301
    %v366 = vunpack.c.l.b16 %v302
    %v367 = vunpack.c.l.b16 %v303
    %v368 = vunpack.c.l.b16 %v304
    %v369 = vunpack.c.l.b16 %v305
    %v370 = vunpack.c.l.b16 %v306
    %v371 = vunpack.c.l.b16 %v307
    %v372 = vunpack.c.l.b16 %v308
    %v373 = vunpack.c.l.b16 %v309
    %v374 = vunpack.c.l.b16 %v310
    %v375 = vunpack.c.l.b16 %v311
    %v376 = vunpack.c.l.b16 %v312
    %v377 = vunpack.c.l.b16 %v313
    %v378 = vunpack.c.l.b16 %v314
    %v379 = vunpack.c.l.b16 %v315
    %v380 = vunpack.c.l.b16 %v316
    %v381 = vunpack.c.l.b16 %v317
    %v382 = vunpack.c.l.b16 %v318
    %v383 = vunpack.c.l.b16 %v319
    %v384 = vpack.c.b16 %v353, %v352
    %v385 = vpack.c.b16 %v355, %v354
    %v386 = vpack.c.b16 %v357, %v356
    %v387 = vpack.c.b16 %v359, %v358
    %v388 = vpack.c.b16 %v361, %v360
    %v389 = vpack.c.b16 %v363, %v362
    %v390 = vpack.c.b16 %v365, %v364
    %v391 = vpack.c.b16 %v367, %v366
    %v392 = vpack.c.b16 %v369, %v368
    %v393 = vpack.c.b16 %v371, %v370
    %v394 = vpack.c.b16 %v373, %v372
    %v395 = vpack.c.b16 %v375, %v374
    %v396 = vpack.c.b16 %v377, %v376
    %v397 = vpack.c.b16 %v379, %v378
    %v398 = vpack.c.b16 %v381, %v380
    %v399 = vpack.c.b16 %v383, %v382
    %416 = vmatpush.bf16.msra.mxu0 %v391
    %417 = vmatpush.bf16.msra.mxu0 %v390
    %418 = vmatpush.bf16.msra.mxu0 %v389
    %419 = vmatpush.bf16.msra.mxu0 %v388
    %420 = vmatpush.bf16.msra.mxu0 %v387
    %421 = vmatpush.bf16.msra.mxu0 %v386
    %422 = vmatpush.bf16.msra.mxu0 %v385
    %423 = vmatpush.bf16.msra.mxu0 %v384
    %424 = vmatmul.bf16.gmra.mxu0 %v286
    %v425 = vpop.f32.mrf.mxu0
    %v426 = vadd.f32 0.0, %v425
    %v427 = vpop.f32.mrf.mxu0
    %428 = vdwg.mxu0
    %429 = vmatpush.bf16.msra.mxu0 %v399
    %430 = vmatpush.bf16.msra.mxu0 %v398
    %431 = vmatpush.bf16.msra.mxu0 %v397
    %432 = vmatpush.bf16.msra.mxu0 %v396
    %433 = vmatpush.bf16.msra.mxu0 %v395
    %434 = vmatpush.bf16.msra.mxu0 %v394
    %435 = vmatpush.bf16.msra.mxu0 %v393
    %436 = vmatpush.bf16.msra.mxu0 %v392
    %437 = vmatmul.bf16.gmra.mxu0 %v287
    %v438 = vpop.f32.mrf.mxu0
    %v439 = vadd.f32 %v426, %v438
    %v440 = vpop.f32.mrf.mxu0
    %441 = vdwg.mxu0
    %v474 = vunpack.c.l.b16 %v172
    %v475 = vunpack.c.l.b16 %v173
    %v476 = vunpack.c.l.b16 %v174
    %v477 = vunpack.c.l.b16 %v175
    %v478 = vunpack.c.l.b16 %v176
    %v479 = vunpack.c.l.b16 %v177
    %v480 = vunpack.c.l.b16 %v178
    %v481 = vunpack.c.l.b16 %v179
    %v482 = vunpack.c.l.b16 %v180
    %v483 = vunpack.c.l.b16 %v181
    %v484 = vunpack.c.l.b16 %v182
    %v485 = vunpack.c.l.b16 %v183
    %v486 = vunpack.c.l.b16 %v184
    %v487 = vunpack.c.l.b16 %v185
    %v488 = vunpack.c.l.b16 %v186
    %v489 = vunpack.c.l.b16 %v187
    %v490 = vunpack.c.l.b16 %v188
    %v491 = vunpack.c.l.b16 %v189
    %v492 = vunpack.c.l.b16 %v190
    %v493 = vunpack.c.l.b16 %v191
    %v494 = vunpack.c.l.b16 %v192
    %v495 = vunpack.c.l.b16 %v193
    %v496 = vunpack.c.l.b16 %v194
    %v497 = vunpack.c.l.b16 %v195
    %v498 = vunpack.c.l.b16 %v196
    %v499 = vunpack.c.l.b16 %v197
    %v500 = vunpack.c.l.b16 %v198
    %v501 = vunpack.c.l.b16 %v199
    %v502 = vunpack.c.l.b16 %v200
    %v503 = vunpack.c.l.b16 %v201
    %v504 = vunpack.c.l.b16 %v202
    %v505 = vunpack.c.l.b16 %v203
    %v506 = vpack.c.b16 %v475, %v474
    %v507 = vpack.c.b16 %v477, %v476
    %v508 = vpack.c.b16 %v479, %v478
    %v509 = vpack.c.b16 %v481, %v480
    %v510 = vpack.c.b16 %v483, %v482
    %v511 = vpack.c.b16 %v485, %v484
    %v512 = vpack.c.b16 %v487, %v486
    %v513 = vpack.c.b16 %v489, %v488
    %v514 = vpack.c.b16 %v491, %v490
    %v515 = vpack.c.b16 %v493, %v492
    %v516 = vpack.c.b16 %v495, %v494
    %v517 = vpack.c.b16 %v497, %v496
    %v518 = vpack.c.b16 %v499, %v498
    %v519 = vpack.c.b16 %v501, %v500
    %v520 = vpack.c.b16 %v503, %v502
    %v521 = vpack.c.b16 %v505, %v504
    %538 = vmatpush.bf16.msra.mxu0 %v513
    %539 = vmatpush.bf16.msra.mxu0 %v512
    %540 = vmatpush.bf16.msra.mxu0 %v511
    %541 = vmatpush.bf16.msra.mxu0 %v510
    %542 = vmatpush.bf16.msra.mxu0 %v509
    %543 = vmatpush.bf16.msra.mxu0 %v508
    %544 = vmatpush.bf16.msra.mxu0 %v507
    %545 = vmatpush.bf16.msra.mxu0 %v506
    %546 = vmatmul.bf16.gmra.mxu0 %v170
    %v547 = vpop.f32.mrf.mxu0
    %v548 = vadd.f32 %v439, %v547
    %v549 = vpop.f32.mrf.mxu0
    %550 = vdwg.mxu0
    %551 = vmatpush.bf16.msra.mxu0 %v521
    %552 = vmatpush.bf16.msra.mxu0 %v520
    %553 = vmatpush.bf16.msra.mxu0 %v519
    %554 = vmatpush.bf16.msra.mxu0 %v518
    %555 = vmatpush.bf16.msra.mxu0 %v517
    %556 = vmatpush.bf16.msra.mxu0 %v516
    %557 = vmatpush.bf16.msra.mxu0 %v515
    %558 = vmatpush.bf16.msra.mxu0 %v514
    %559 = vmatmul.bf16.gmra.mxu0 %v171
    %v560 = vpop.f32.mrf.mxu0
    %v561 = vadd.f32 %v548, %v560
    %v562 = vpop.f32.mrf.mxu0
    %563 = vdwg.mxu0
    %v564 = vld [vmem:[#allocation5 + $0x10] sm:$0xff]
    %v565 = vld [vmem:[#allocation5 + $0x40] sm:$0xff]
    %v566 = vld [vmem:[#allocation5 + $0x70] sm:$0xff]
    %v567 = vld [vmem:[#allocation5 + $0xa0] sm:$0xff]
    %v568 = vld [vmem:[#allocation5 + $0xd0] sm:$0xff]
    %v569 = vld [vmem:[#allocation5 + $0x100] sm:$0xff]
    %v570 = vld [vmem:[#allocation5 + $0x130] sm:$0x11]
    %v571 = vld [vmem:[#allocation7 + $0x4] sm:$0x3]
    %v573 = vperm.slane %v571, 0
    %v574 = vperm.slane %v571, 1
    %v584 = vunpack.c.l.b16 %v564
    %v585 = vunpack.c.h.b16 %v564
    %v586 = vunpack.c.l.b16 %v565
    %v587 = vunpack.c.h.b16 %v565
    %v588 = vunpack.c.l.b16 %v566
    %v589 = vunpack.c.h.b16 %v566
    %v590 = vunpack.c.l.b16 %v567
    %v591 = vunpack.c.h.b16 %v567
    %v592 = vunpack.c.l.b16 %v568
    %v593 = vunpack.c.h.b16 %v568
    %v594 = vunpack.c.l.b16 %v569
    %v595 = vunpack.c.h.b16 %v569
    %v596 = vunpack.c.l.b16 %v570
    %v597 = vunpack.c.h.b16 %v570
    %v598 = vpack.c.b16 %v586, %v584
    %v599 = vpack.c.b16 %v587, %v585
    %v600 = vpack.c.b16 %v590, %v588
    %v601 = vpack.c.b16 %v591, %v589
    %v602 = vpack.c.b16 %v594, %v592
    %v603 = vpack.c.b16 %v595, %v593
    %v604 = vpack.c.b16 %v596, %v596
    %v605 = vpack.c.b16 %v597, %v597
    %v613 = vsel %vm135, %v604, 0
    %v616 = vsel %vm135, %v605, 0
    %618 = vmatpush.bf16.msra.mxu0 0
    %619 = vmatpush.bf16.msra.mxu0 0
    %620 = vmatpush.bf16.msra.mxu0 0
    %621 = vmatpush.bf16.msra.mxu0 0
    %622 = vmatpush.bf16.msra.mxu0 %v613
    %623 = vmatpush.bf16.msra.mxu0 %v602
    %624 = vmatpush.bf16.msra.mxu0 %v600
    %625 = vmatpush.bf16.msra.mxu0 %v598
    %626 = vmatmul.bf16.gmra.mxu0 %v133
    %v627 = vpop.f32.mrf.mxu0
    %v628 = vadd.f32 %v573, %v627
    %v629 = vpop.f32.mrf.mxu0
    %630 = vdwg.mxu0
    %631 = vmatpush.bf16.msra.mxu0 0
    %632 = vmatpush.bf16.msra.mxu0 0
    %633 = vmatpush.bf16.msra.mxu0 0
    %634 = vmatpush.bf16.msra.mxu0 0
    %635 = vmatpush.bf16.msra.mxu0 %v616
    %636 = vmatpush.bf16.msra.mxu0 %v603
    %637 = vmatpush.bf16.msra.mxu0 %v601
    %638 = vmatpush.bf16.msra.mxu0 %v599
    %639 = vmatmul.bf16.gmra.mxu0 %v133
    %v640 = vpop.f32.mrf.mxu0
    %v641 = vadd.f32 %v574, %v640
    %v642 = vpop.f32.mrf.mxu0
    %643 = vdwg.mxu0
    %v644 = vmax.f32 %v628, 0.0
    %v645 = vmax.f32 %v641, 0.0
    %v646 = vpack.c.bf16 %v644, %v644
    %v647 = vpack.c.bf16 %v645, %v645
    %v648 = vld [vmem:[#allocation8 + $0x100] sm:$0xf]
    %v649 = vld [vmem:[#allocation8 + $0x104] sm:$0xf]
    %v650 = vld [vmem:[#allocation8 + $0x108] sm:$0xf]
    %v651 = vld [vmem:[#allocation8 + $0x10c] sm:$0xf]
    %v652 = vld [vmem:[#allocation8 + $0x110] sm:$0xf]
    %v653 = vld [vmem:[#allocation8 + $0x114] sm:$0xf]
    %v654 = vld [vmem:[#allocation8 + $0x118] sm:$0xf]
    %v655 = vld [vmem:[#allocation8 + $0x11c] sm:$0xf]
    %v656 = vld [vmem:[#allocation8 + $0x120] sm:$0xf]
    %v657 = vld [vmem:[#allocation8 + $0x124] sm:$0xf]
    %v658 = vld [vmem:[#allocation8 + $0x128] sm:$0xf]
    %v659 = vld [vmem:[#allocation8 + $0x12c] sm:$0xf]
    %v660 = vld [vmem:[#allocation8 + $0x130] sm:$0xf]
    %v661 = vld [vmem:[#allocation8 + $0x134] sm:$0xf]
    %v662 = vld [vmem:[#allocation8 + $0x138] sm:$0xf]
    %v663 = vld [vmem:[#allocation8 + $0x13c] sm:$0xf]
    %v664 = vld [vmem:[#allocation8 + $0x140] sm:$0xf]
    %v665 = vld [vmem:[#allocation8 + $0x144] sm:$0xf]
    %v666 = vld [vmem:[#allocation8 + $0x148] sm:$0xf]
    %v667 = vld [vmem:[#allocation8 + $0x14c] sm:$0xf]
    %v668 = vld [vmem:[#allocation8 + $0x150] sm:$0xf]
    %v669 = vld [vmem:[#allocation8 + $0x154] sm:$0xf]
    %v670 = vld [vmem:[#allocation8 + $0x158] sm:$0xf]
    %v671 = vld [vmem:[#allocation8 + $0x15c] sm:$0xf]
    %v672 = vld [vmem:[#allocation8 + $0x160] sm:$0xf]
    %v673 = vld [vmem:[#allocation8 + $0x164] sm:$0xf]
    %v674 = vld [vmem:[#allocation8 + $0x168] sm:$0xf]
    %v675 = vld [vmem:[#allocation8 + $0x16c] sm:$0xf]
    %v676 = vld [vmem:[#allocation8 + $0x170] sm:$0xf]
    %v677 = vld [vmem:[#allocation8 + $0x174] sm:$0xf]
    %v678 = vld [vmem:[#allocation8 + $0x178] sm:$0xf]
    %v679 = vld [vmem:[#allocation8 + $0x17c] sm:$0xf]
    %v712 = vunpack.c.l.b16 %v648
    %v713 = vunpack.c.l.b16 %v649
    %v714 = vunpack.c.l.b16 %v650
    %v715 = vunpack.c.l.b16 %v651
    %v716 = vunpack.c.l.b16 %v652
    %v717 = vunpack.c.l.b16 %v653
    %v718 = vunpack.c.l.b16 %v654
    %v719 = vunpack.c.l.b16 %v655
    %v720 = vunpack.c.l.b16 %v656
    %v721 = vunpack.c.l.b16 %v657
    %v722 = vunpack.c.l.b16 %v658
    %v723 = vunpack.c.l.b16 %v659
    %v724 = vunpack.c.l.b16 %v660
    %v725 = vunpack.c.l.b16 %v661
    %v726 = vunpack.c.l.b16 %v662
    %v727 = vunpack.c.l.b16 %v663
    %v728 = vunpack.c.l.b16 %v664
    %v729 = vunpack.c.l.b16 %v665
    %v730 = vunpack.c.l.b16 %v666
    %v731 = vunpack.c.l.b16 %v667
    %v732 = vunpack.c.l.b16 %v668
    %v733 = vunpack.c.l.b16 %v669
    %v734 = vunpack.c.l.b16 %v670
    %v735 = vunpack.c.l.b16 %v671
    %v736 = vunpack.c.l.b16 %v672
    %v737 = vunpack.c.l.b16 %v673
    %v738 = vunpack.c.l.b16 %v674
    %v739 = vunpack.c.l.b16 %v675
    %v740 = vunpack.c.l.b16 %v676
    %v741 = vunpack.c.l.b16 %v677
    %v742 = vunpack.c.l.b16 %v678
    %v743 = vunpack.c.l.b16 %v679
    %v744 = vpack.c.b16 %v713, %v712
    %v745 = vpack.c.b16 %v715, %v714
    %v746 = vpack.c.b16 %v717, %v716
    %v747 = vpack.c.b16 %v719, %v718
    %v748 = vpack.c.b16 %v721, %v720
    %v749 = vpack.c.b16 %v723, %v722
    %v750 = vpack.c.b16 %v725, %v724
    %v751 = vpack.c.b16 %v727, %v726
    %v752 = vpack.c.b16 %v729, %v728
    %v753 = vpack.c.b16 %v731, %v730
    %v754 = vpack.c.b16 %v733, %v732
    %v755 = vpack.c.b16 %v735, %v734
    %v756 = vpack.c.b16 %v737, %v736
    %v757 = vpack.c.b16 %v739, %v738
    %v758 = vpack.c.b16 %v741, %v740
    %v759 = vpack.c.b16 %v743, %v742
    %776 = vmatpush.bf16.msra.mxu0 %v751
    %777 = vmatpush.bf16.msra.mxu0 %v750
    %778 = vmatpush.bf16.msra.mxu0 %v749
    %779 = vmatpush.bf16.msra.mxu0 %v748
    %780 = vmatpush.bf16.msra.mxu0 %v747
    %781 = vmatpush.bf16.msra.mxu0 %v746
    %782 = vmatpush.bf16.msra.mxu0 %v745
    %783 = vmatpush.bf16.msra.mxu0 %v744
    %784 = vmatmul.bf16.gmra.mxu0 %v646
    %v785 = vpop.f32.mrf.mxu0
    %v786 = vadd.f32 0.0, %v785
    %v787 = vpop.f32.mrf.mxu0
    %788 = vdwg.mxu0
    %789 = vmatpush.bf16.msra.mxu0 %v759
    %790 = vmatpush.bf16.msra.mxu0 %v758
    %791 = vmatpush.bf16.msra.mxu0 %v757
    %792 = vmatpush.bf16.msra.mxu0 %v756
    %793 = vmatpush.bf16.msra.mxu0 %v755
    %794 = vmatpush.bf16.msra.mxu0 %v754
    %795 = vmatpush.bf16.msra.mxu0 %v753
    %796 = vmatpush.bf16.msra.mxu0 %v752
    %797 = vmatmul.bf16.gmra.mxu0 %v647
    %v798 = vpop.f32.mrf.mxu0
    %v799 = vadd.f32 %v786, %v798
    %v800 = vpop.f32.mrf.mxu0
    %801 = vdwg.mxu0
    %v802 = vadd.f32 %v561, %v799
    %v803 = vld [vmem:[#allocation5 + $0x18] sm:$0xff]
    %v804 = vld [vmem:[#allocation5 + $0x48] sm:$0xff]
    %v805 = vld [vmem:[#allocation5 + $0x78] sm:$0xff]
    %v806 = vld [vmem:[#allocation5 + $0xa8] sm:$0xff]
    %v807 = vld [vmem:[#allocation5 + $0xd8] sm:$0xff]
    %v808 = vld [vmem:[#allocation5 + $0x108] sm:$0xff]
    %v809 = vld [vmem:[#allocation5 + $0x138] sm:$0x11]
    %v810 = vld [vmem:[#allocation7 + $0x6] sm:$0x3]
    %v812 = vperm.slane %v810, 0
    %v813 = vperm.slane %v810, 1
    %v823 = vunpack.c.l.b16 %v803
    %v824 = vunpack.c.h.b16 %v803
    %v825 = vunpack.c.l.b16 %v804
    %v826 = vunpack.c.h.b16 %v804
    %v827 = vunpack.c.l.b16 %v805
    %v828 = vunpack.c.h.b16 %v805
    %v829 = vunpack.c.l.b16 %v806
    %v830 = vunpack.c.h.b16 %v806
    %v831 = vunpack.c.l.b16 %v807
    %v832 = vunpack.c.h.b16 %v807
    %v833 = vunpack.c.l.b16 %v808
    %v834 = vunpack.c.h.b16 %v808
    %v835 = vunpack.c.l.b16 %v809
    %v836 = vunpack.c.h.b16 %v809
    %v837 = vpack.c.b16 %v825, %v823
    %v838 = vpack.c.b16 %v826, %v824
    %v839 = vpack.c.b16 %v829, %v827
    %v840 = vpack.c.b16 %v830, %v828
    %v841 = vpack.c.b16 %v833, %v831
    %v842 = vpack.c.b16 %v834, %v832
    %v843 = vpack.c.b16 %v835, %v835
    %v844 = vpack.c.b16 %v836, %v836
    %v852 = vsel %vm135, %v843, 0
    %v855 = vsel %vm135, %v844, 0
    %857 = vmatpush.bf16.msra.mxu0 0
    %858 = vmatpush.bf16.msra.mxu0 0
    %859 = vmatpush.bf16.msra.mxu0 0
    %860 = vmatpush.bf16.msra.mxu0 0
    %861 = vmatpush.bf16.msra.mxu0 %v852
    %862 = vmatpush.bf16.msra.mxu0 %v841
    %863 = vmatpush.bf16.msra.mxu0 %v839
    %864 = vmatpush.bf16.msra.mxu0 %v837
    %865 = vmatmul.bf16.gmra.mxu0 %v133
    %v866 = vpop.f32.mrf.mxu0
    %v867 = vadd.f32 %v812, %v866
    %v868 = vpop.f32.mrf.mxu0
    %869 = vdwg.mxu0
    %870 = vmatpush.bf16.msra.mxu0 0
    %871 = vmatpush.bf16.msra.mxu0 0
    %872 = vmatpush.bf16.msra.mxu0 0
    %873 = vmatpush.bf16.msra.mxu0 0
    %874 = vmatpush.bf16.msra.mxu0 %v855
    %875 = vmatpush.bf16.msra.mxu0 %v842
    %876 = vmatpush.bf16.msra.mxu0 %v840
    %877 = vmatpush.bf16.msra.mxu0 %v838
    %878 = vmatmul.bf16.gmra.mxu0 %v133
    %v879 = vpop.f32.mrf.mxu0
    %v880 = vadd.f32 %v813, %v879
    %v881 = vpop.f32.mrf.mxu0
    %882 = vdwg.mxu0
    %v883 = vmax.f32 %v867, 0.0
    %v884 = vmax.f32 %v880, 0.0
    %v885 = vpack.c.bf16 %v883, %v883
    %v886 = vpack.c.bf16 %v884, %v884
    %v887 = vld [vmem:[#allocation8 + $0x180] sm:$0xf]
    %v888 = vld [vmem:[#allocation8 + $0x184] sm:$0xf]
    %v889 = vld [vmem:[#allocation8 + $0x188] sm:$0xf]
    %v890 = vld [vmem:[#allocation8 + $0x18c] sm:$0xf]
    %v891 = vld [vmem:[#allocation8 + $0x190] sm:$0xf]
    %v892 = vld [vmem:[#allocation8 + $0x194] sm:$0xf]
    %v893 = vld [vmem:[#allocation8 + $0x198] sm:$0xf]
    %v894 = vld [vmem:[#allocation8 + $0x19c] sm:$0xf]
    %v895 = vld [vmem:[#allocation8 + $0x1a0] sm:$0xf]
    %v896 = vld [vmem:[#allocation8 + $0x1a4] sm:$0xf]
    %v897 = vld [vmem:[#allocation8 + $0x1a8] sm:$0xf]
    %v898 = vld [vmem:[#allocation8 + $0x1ac] sm:$0xf]
    %v899 = vld [vmem:[#allocation8 + $0x1b0] sm:$0xf]
    %v900 = vld [vmem:[#allocation8 + $0x1b4] sm:$0xf]
    %v901 = vld [vmem:[#allocation8 + $0x1b8] sm:$0xf]
    %v902 = vld [vmem:[#allocation8 + $0x1bc] sm:$0xf]
    %v903 = vld [vmem:[#allocation8 + $0x1c0] sm:$0xf]
    %v904 = vld [vmem:[#allocation8 + $0x1c4] sm:$0xf]
    %v905 = vld [vmem:[#allocation8 + $0x1c8] sm:$0xf]
    %v906 = vld [vmem:[#allocation8 + $0x1cc] sm:$0xf]
    %v907 = vld [vmem:[#allocation8 + $0x1d0] sm:$0xf]
    %v908 = vld [vmem:[#allocation8 + $0x1d4] sm:$0xf]
    %v909 = vld [vmem:[#allocation8 + $0x1d8] sm:$0xf]
    %v910 = vld [vmem:[#allocation8 + $0x1dc] sm:$0xf]
    %v911 = vld [vmem:[#allocation8 + $0x1e0] sm:$0xf]
    %v912 = vld [vmem:[#allocation8 + $0x1e4] sm:$0xf]
    %v913 = vld [vmem:[#allocation8 + $0x1e8] sm:$0xf]
    %v914 = vld [vmem:[#allocation8 + $0x1ec] sm:$0xf]
    %v915 = vld [vmem:[#allocation8 + $0x1f0] sm:$0xf]
    %v916 = vld [vmem:[#allocation8 + $0x1f4] sm:$0xf]
    %v917 = vld [vmem:[#allocation8 + $0x1f8] sm:$0xf]
    %v918 = vld [vmem:[#allocation8 + $0x1fc] sm:$0xf]
    %v951 = vunpack.c.l.b16 %v887
    %v952 = vunpack.c.l.b16 %v888
    %v953 = vunpack.c.l.b16 %v889
    %v954 = vunpack.c.l.b16 %v890
    %v955 = vunpack.c.l.b16 %v891
    %v956 = vunpack.c.l.b16 %v892
    %v957 = vunpack.c.l.b16 %v893
    %v958 = vunpack.c.l.b16 %v894
    %v959 = vunpack.c.l.b16 %v895
    %v960 = vunpack.c.l.b16 %v896
    %v961 = vunpack.c.l.b16 %v897
    %v962 = vunpack.c.l.b16 %v898
    %v963 = vunpack.c.l.b16 %v899
    %v964 = vunpack.c.l.b16 %v900
    %v965 = vunpack.c.l.b16 %v901
    %v966 = vunpack.c.l.b16 %v902
    %v967 = vunpack.c.l.b16 %v903
    %v968 = vunpack.c.l.b16 %v904
    %v969 = vunpack.c.l.b16 %v905
    %v970 = vunpack.c.l.b16 %v906
    %v971 = vunpack.c.l.b16 %v907
    %v972 = vunpack.c.l.b16 %v908
    %v973 = vunpack.c.l.b16 %v909
    %v974 = vunpack.c.l.b16 %v910
    %v975 = vunpack.c.l.b16 %v911
    %v976 = vunpack.c.l.b16 %v912
    %v977 = vunpack.c.l.b16 %v913
    %v978 = vunpack.c.l.b16 %v914
    %v979 = vunpack.c.l.b16 %v915
    %v980 = vunpack.c.l.b16 %v916
    %v981 = vunpack.c.l.b16 %v917
    %v982 = vunpack.c.l.b16 %v918
    %v983 = vpack.c.b16 %v952, %v951
    %v984 = vpack.c.b16 %v954, %v953
    %v985 = vpack.c.b16 %v956, %v955
    %v986 = vpack.c.b16 %v958, %v957
    %v987 = vpack.c.b16 %v960, %v959
    %v988 = vpack.c.b16 %v962, %v961
    %v989 = vpack.c.b16 %v964, %v963
    %v990 = vpack.c.b16 %v966, %v965
    %v991 = vpack.c.b16 %v968, %v967
    %v992 = vpack.c.b16 %v970, %v969
    %v993 = vpack.c.b16 %v972, %v971
    %v994 = vpack.c.b16 %v974, %v973
    %v995 = vpack.c.b16 %v976, %v975
    %v996 = vpack.c.b16 %v978, %v977
    %v997 = vpack.c.b16 %v980, %v979
    %v998 = vpack.c.b16 %v982, %v981
    %1015 = vmatpush.bf16.msra.mxu0 %v990
    %1016 = vmatpush.bf16.msra.mxu0 %v989
    %1017 = vmatpush.bf16.msra.mxu0 %v988
    %1018 = vmatpush.bf16.msra.mxu0 %v987
    %1019 = vmatpush.bf16.msra.mxu0 %v986
    %1020 = vmatpush.bf16.msra.mxu0 %v985
    %1021 = vmatpush.bf16.msra.mxu0 %v984
    %1022 = vmatpush.bf16.msra.mxu0 %v983
    %1023 = vmatmul.bf16.gmra.mxu0 %v885
    %v1024 = vpop.f32.mrf.mxu0
    %v1025 = vadd.f32 0.0, %v1024
    %v1026 = vpop.f32.mrf.mxu0
    %1027 = vdwg.mxu0
    %1028 = vmatpush.bf16.msra.mxu0 %v998
    %1029 = vmatpush.bf16.msra.mxu0 %v997
    %1030 = vmatpush.bf16.msra.mxu0 %v996
    %1031 = vmatpush.bf16.msra.mxu0 %v995
    %1032 = vmatpush.bf16.msra.mxu0 %v994
    %1033 = vmatpush.bf16.msra.mxu0 %v993
    %1034 = vmatpush.bf16.msra.mxu0 %v992
    %1035 = vmatpush.bf16.msra.mxu0 %v991
    %1036 = vmatmul.bf16.gmra.mxu0 %v886
    %v1037 = vpop.f32.mrf.mxu0
    %v1038 = vadd.f32 %v1025, %v1037
    %v1039 = vpop.f32.mrf.mxu0
    %1040 = vdwg.mxu0
    %v1041 = vadd.f32 %v802, %v1038
    %v1042 = vld [vmem:[#allocation5 + $0x20] sm:$0xff]
    %v1043 = vld [vmem:[#allocation5 + $0x50] sm:$0xff]
    %v1044 = vld [vmem:[#allocation5 + $0x80] sm:$0xff]
    %v1045 = vld [vmem:[#allocation5 + $0xb0] sm:$0xff]
    %v1046 = vld [vmem:[#allocation5 + $0xe0] sm:$0xff]
    %v1047 = vld [vmem:[#allocation5 + $0x110] sm:$0xff]
    %v1048 = vld [vmem:[#allocation5 + $0x140] sm:$0x11]
    %v1049 = vld [vmem:[#allocation7 + $0x8] sm:$0x3]
    %v1051 = vperm.slane %v1049, 0
    %v1052 = vperm.slane %v1049, 1
    %v1062 = vunpack.c.l.b16 %v1042
    %v1063 = vunpack.c.h.b16 %v1042
    %v1064 = vunpack.c.l.b16 %v1043
    %v1065 = vunpack.c.h.b16 %v1043
    %v1066 = vunpack.c.l.b16 %v1044
    %v1067 = vunpack.c.h.b16 %v1044
    %v1068 = vunpack.c.l.b16 %v1045
    %v1069 = vunpack.c.h.b16 %v1045
    %v1070 = vunpack.c.l.b16 %v1046
    %v1071 = vunpack.c.h.b16 %v1046
    %v1072 = vunpack.c.l.b16 %v1047
    %v1073 = vunpack.c.h.b16 %v1047
    %v1074 = vunpack.c.l.b16 %v1048
    %v1075 = vunpack.c.h.b16 %v1048
    %v1076 = vpack.c.b16 %v1064, %v1062
    %v1077 = vpack.c.b16 %v1065, %v1063
    %v1078 = vpack.c.b16 %v1068, %v1066
    %v1079 = vpack.c.b16 %v1069, %v1067
    %v1080 = vpack.c.b16 %v1072, %v1070
    %v1081 = vpack.c.b16 %v1073, %v1071
    %v1082 = vpack.c.b16 %v1074, %v1074
    %v1083 = vpack.c.b16 %v1075, %v1075
    %v1091 = vsel %vm135, %v1082, 0
    %v1094 = vsel %vm135, %v1083, 0
    %1096 = vmatpush.bf16.msra.mxu0 0
    %1097 = vmatpush.bf16.msra.mxu0 0
    %1098 = vmatpush.bf16.msra.mxu0 0
    %1099 = vmatpush.bf16.msra.mxu0 0
    %1100 = vmatpush.bf16.msra.mxu0 %v1091
    %1101 = vmatpush.bf16.msra.mxu0 %v1080
    %1102 = vmatpush.bf16.msra.mxu0 %v1078
    %1103 = vmatpush.bf16.msra.mxu0 %v1076
    %1104 = vmatmul.bf16.gmra.mxu0 %v133
    %v1105 = vpop.f32.mrf.mxu0
    %v1106 = vadd.f32 %v1051, %v1105
    %v1107 = vpop.f32.mrf.mxu0
    %1108 = vdwg.mxu0
    %1109 = vmatpush.bf16.msra.mxu0 0
    %1110 = vmatpush.bf16.msra.mxu0 0
    %1111 = vmatpush.bf16.msra.mxu0 0
    %1112 = vmatpush.bf16.msra.mxu0 0
    %1113 = vmatpush.bf16.msra.mxu0 %v1094
    %1114 = vmatpush.bf16.msra.mxu0 %v1081
    %1115 = vmatpush.bf16.msra.mxu0 %v1079
    %1116 = vmatpush.bf16.msra.mxu0 %v1077
    %1117 = vmatmul.bf16.gmra.mxu0 %v133
    %v1118 = vpop.f32.mrf.mxu0
    %v1119 = vadd.f32 %v1052, %v1118
    %v1120 = vpop.f32.mrf.mxu0
    %1121 = vdwg.mxu0
    %v1122 = vmax.f32 %v1106, 0.0
    %v1123 = vmax.f32 %v1119, 0.0
    %v1124 = vpack.c.bf16 %v1122, %v1122
    %v1125 = vpack.c.bf16 %v1123, %v1123
    %v1126 = vld [vmem:[#allocation8 + $0x200] sm:$0xf]
    %v1127 = vld [vmem:[#allocation8 + $0x204] sm:$0xf]
    %v1128 = vld [vmem:[#allocation8 + $0x208] sm:$0xf]
    %v1129 = vld [vmem:[#allocation8 + $0x20c] sm:$0xf]
    %v1130 = vld [vmem:[#allocation8 + $0x210] sm:$0xf]
    %v1131 = vld [vmem:[#allocation8 + $0x214] sm:$0xf]
    %v1132 = vld [vmem:[#allocation8 + $0x218] sm:$0xf]
    %v1133 = vld [vmem:[#allocation8 + $0x21c] sm:$0xf]
    %v1134 = vld [vmem:[#allocation8 + $0x220] sm:$0xf]
    %v1135 = vld [vmem:[#allocation8 + $0x224] sm:$0xf]
    %v1136 = vld [vmem:[#allocation8 + $0x228] sm:$0xf]
    %v1137 = vld [vmem:[#allocation8 + $0x22c] sm:$0xf]
    %v1138 = vld [vmem:[#allocation8 + $0x230] sm:$0xf]
    %v1139 = vld [vmem:[#allocation8 + $0x234] sm:$0xf]
    %v1140 = vld [vmem:[#allocation8 + $0x238] sm:$0xf]
    %v1141 = vld [vmem:[#allocation8 + $0x23c] sm:$0xf]
    %v1142 = vld [vmem:[#allocation8 + $0x240] sm:$0xf]
    %v1143 = vld [vmem:[#allocation8 + $0x244] sm:$0xf]
    %v1144 = vld [vmem:[#allocation8 + $0x248] sm:$0xf]
    %v1145 = vld [vmem:[#allocation8 + $0x24c] sm:$0xf]
    %v1146 = vld [vmem:[#allocation8 + $0x250] sm:$0xf]
    %v1147 = vld [vmem:[#allocation8 + $0x254] sm:$0xf]
    %v1148 = vld [vmem:[#allocation8 + $0x258] sm:$0xf]
    %v1149 = vld [vmem:[#allocation8 + $0x25c] sm:$0xf]
    %v1150 = vld [vmem:[#allocation8 + $0x260] sm:$0xf]
    %v1151 = vld [vmem:[#allocation8 + $0x264] sm:$0xf]
    %v1152 = vld [vmem:[#allocation8 + $0x268] sm:$0xf]
    %v1153 = vld [vmem:[#allocation8 + $0x26c] sm:$0xf]
    %v1154 = vld [vmem:[#allocation8 + $0x270] sm:$0xf]
    %v1155 = vld [vmem:[#allocation8 + $0x274] sm:$0xf]
    %v1156 = vld [vmem:[#allocation8 + $0x278] sm:$0xf]
    %v1157 = vld [vmem:[#allocation8 + $0x27c] sm:$0xf]
    %v1190 = vunpack.c.l.b16 %v1126
    %v1191 = vunpack.c.l.b16 %v1127
    %v1192 = vunpack.c.l.b16 %v1128
    %v1193 = vunpack.c.l.b16 %v1129
    %v1194 = vunpack.c.l.b16 %v1130
    %v1195 = vunpack.c.l.b16 %v1131
    %v1196 = vunpack.c.l.b16 %v1132
    %v1197 = vunpack.c.l.b16 %v1133
    %v1198 = vunpack.c.l.b16 %v1134
    %v1199 = vunpack.c.l.b16 %v1135
    %v1200 = vunpack.c.l.b16 %v1136
    %v1201 = vunpack.c.l.b16 %v1137
    %v1202 = vunpack.c.l.b16 %v1138
    %v1203 = vunpack.c.l.b16 %v1139
    %v1204 = vunpack.c.l.b16 %v1140
    %v1205 = vunpack.c.l.b16 %v1141
    %v1206 = vunpack.c.l.b16 %v1142
    %v1207 = vunpack.c.l.b16 %v1143
    %v1208 = vunpack.c.l.b16 %v1144
    %v1209 = vunpack.c.l.b16 %v1145
    %v1210 = vunpack.c.l.b16 %v1146
    %v1211 = vunpack.c.l.b16 %v1147
    %v1212 = vunpack.c.l.b16 %v1148
    %v1213 = vunpack.c.l.b16 %v1149
    %v1214 = vunpack.c.l.b16 %v1150
    %v1215 = vunpack.c.l.b16 %v1151
    %v1216 = vunpack.c.l.b16 %v1152
    %v1217 = vunpack.c.l.b16 %v1153
    %v1218 = vunpack.c.l.b16 %v1154
    %v1219 = vunpack.c.l.b16 %v1155
    %v1220 = vunpack.c.l.b16 %v1156
    %v1221 = vunpack.c.l.b16 %v1157
    %v1222 = vpack.c.b16 %v1191, %v1190
    %v1223 = vpack.c.b16 %v1193, %v1192
    %v1224 = vpack.c.b16 %v1195, %v1194
    %v1225 = vpack.c.b16 %v1197, %v1196
    %v1226 = vpack.c.b16 %v1199, %v1198
    %v1227 = vpack.c.b16 %v1201, %v1200
    %v1228 = vpack.c.b16 %v1203, %v1202
    %v1229 = vpack.c.b16 %v1205, %v1204
    %v1230 = vpack.c.b16 %v1207, %v1206
    %v1231 = vpack.c.b16 %v1209, %v1208
    %v1232 = vpack.c.b16 %v1211, %v1210
    %v1233 = vpack.c.b16 %v1213, %v1212
    %v1234 = vpack.c.b16 %v1215, %v1214
    %v1235 = vpack.c.b16 %v1217, %v1216
    %v1236 = vpack.c.b16 %v1219, %v1218
    %v1237 = vpack.c.b16 %v1221, %v1220
    %1254 = vmatpush.bf16.msra.mxu0 %v1229
    %1255 = vmatpush.bf16.msra.mxu0 %v1228
    %1256 = vmatpush.bf16.msra.mxu0 %v1227
    %1257 = vmatpush.bf16.msra.mxu0 %v1226
    %1258 = vmatpush.bf16.msra.mxu0 %v1225
    %1259 = vmatpush.bf16.msra.mxu0 %v1224
    %1260 = vmatpush.bf16.msra.mxu0 %v1223
    %1261 = vmatpush.bf16.msra.mxu0 %v1222
    %1262 = vmatmul.bf16.gmra.mxu0 %v1124
    %v1263 = vpop.f32.mrf.mxu0
    %v1264 = vadd.f32 0.0, %v1263
    %v1265 = vpop.f32.mrf.mxu0
    %1266 = vdwg.mxu0
    %1267 = vmatpush.bf16.msra.mxu0 %v1237
    %1268 = vmatpush.bf16.msra.mxu0 %v1236
    %1269 = vmatpush.bf16.msra.mxu0 %v1235
    %1270 = vmatpush.bf16.msra.mxu0 %v1234
    %1271 = vmatpush.bf16.msra.mxu0 %v1233
    %1272 = vmatpush.bf16.msra.mxu0 %v1232
    %1273 = vmatpush.bf16.msra.mxu0 %v1231
    %1274 = vmatpush.bf16.msra.mxu0 %v1230
    %1275 = vmatmul.bf16.gmra.mxu0 %v1125
    %v1276 = vpop.f32.mrf.mxu0
    %v1277 = vadd.f32 %v1264, %v1276
    %v1278 = vpop.f32.mrf.mxu0
    %1279 = vdwg.mxu0
    %v1280 = vadd.f32 %v1041, %v1277
    %v1281 = vld [vmem:[#allocation5 + $0x28] sm:$0xff]
    %v1282 = vld [vmem:[#allocation5 + $0x58] sm:$0xff]
    %v1283 = vld [vmem:[#allocation5 + $0x88] sm:$0xff]
    %v1284 = vld [vmem:[#allocation5 + $0xb8] sm:$0xff]
    %v1285 = vld [vmem:[#allocation5 + $0xe8] sm:$0xff]
    %v1286 = vld [vmem:[#allocation5 + $0x118] sm:$0xff]
    %v1287 = vld [vmem:[#allocation5 + $0x148] sm:$0x11]
    %v1288 = vld [vmem:[#allocation7 + $0xa] sm:$0x3]
    %v1290 = vperm.slane %v1288, 0
    %v1291 = vperm.slane %v1288, 1
    %v1301 = vunpack.c.l.b16 %v1281
    %v1302 = vunpack.c.h.b16 %v1281
    %v1303 = vunpack.c.l.b16 %v1282
    %v1304 = vunpack.c.h.b16 %v1282
    %v1305 = vunpack.c.l.b16 %v1283
    %v1306 = vunpack.c.h.b16 %v1283
    %v1307 = vunpack.c.l.b16 %v1284
    %v1308 = vunpack.c.h.b16 %v1284
    %v1309 = vunpack.c.l.b16 %v1285
    %v1310 = vunpack.c.h.b16 %v1285
    %v1311 = vunpack.c.l.b16 %v1286
    %v1312 = vunpack.c.h.b16 %v1286
    %v1313 = vunpack.c.l.b16 %v1287
    %v1314 = vunpack.c.h.b16 %v1287
    %v1315 = vpack.c.b16 %v1303, %v1301
    %v1316 = vpack.c.b16 %v1304, %v1302
    %v1317 = vpack.c.b16 %v1307, %v1305
    %v1318 = vpack.c.b16 %v1308, %v1306
    %v1319 = vpack.c.b16 %v1311, %v1309
    %v1320 = vpack.c.b16 %v1312, %v1310
    %v1321 = vpack.c.b16 %v1313, %v1313
    %v1322 = vpack.c.b16 %v1314, %v1314
    %v1330 = vsel %vm135, %v1321, 0
    %v1333 = vsel %vm135, %v1322, 0
    %1335 = vmatpush.bf16.msra.mxu0 0
    %1336 = vmatpush.bf16.msra.mxu0 0
    %1337 = vmatpush.bf16.msra.mxu0 0
    %1338 = vmatpush.bf16.msra.mxu0 0
    %1339 = vmatpush.bf16.msra.mxu0 %v1330
    %1340 = vmatpush.bf16.msra.mxu0 %v1319
    %1341 = vmatpush.bf16.msra.mxu0 %v1317
    %1342 = vmatpush.bf16.msra.mxu0 %v1315
    %1343 = vmatmul.bf16.gmra.mxu0 %v133
    %v1344 = vpop.f32.mrf.mxu0
    %v1345 = vadd.f32 %v1290, %v1344
    %v1346 = vpop.f32.mrf.mxu0
    %1347 = vdwg.mxu0
    %1348 = vmatpush.bf16.msra.mxu0 0
    %1349 = vmatpush.bf16.msra.mxu0 0
    %1350 = vmatpush.bf16.msra.mxu0 0
    %1351 = vmatpush.bf16.msra.mxu0 0
    %1352 = vmatpush.bf16.msra.mxu0 %v1333
    %1353 = vmatpush.bf16.msra.mxu0 %v1320
    %1354 = vmatpush.bf16.msra.mxu0 %v1318
    %1355 = vmatpush.bf16.msra.mxu0 %v1316
    %1356 = vmatmul.bf16.gmra.mxu0 %v133
    %v1357 = vpop.f32.mrf.mxu0
    %v1358 = vadd.f32 %v1291, %v1357
    %v1359 = vpop.f32.mrf.mxu0
    %1360 = vdwg.mxu0
    %v1361 = vmax.f32 %v1345, 0.0
    %v1362 = vmax.f32 %v1358, 0.0
    %v1363 = vpack.c.bf16 %v1361, %v1361
    %v1364 = vpack.c.bf16 %v1362, %v1362
    %v1365 = vld [vmem:[#allocation8 + $0x280] sm:$0xf]
    %v1366 = vld [vmem:[#allocation8 + $0x284] sm:$0xf]
    %v1367 = vld [vmem:[#allocation8 + $0x288] sm:$0xf]
    %v1368 = vld [vmem:[#allocation8 + $0x28c] sm:$0xf]
    %v1369 = vld [vmem:[#allocation8 + $0x290] sm:$0xf]
    %v1370 = vld [vmem:[#allocation8 + $0x294] sm:$0xf]
    %v1371 = vld [vmem:[#allocation8 + $0x298] sm:$0xf]
    %v1372 = vld [vmem:[#allocation8 + $0x29c] sm:$0xf]
    %v1373 = vld [vmem:[#allocation8 + $0x2a0] sm:$0xf]
    %v1374 = vld [vmem:[#allocation8 + $0x2a4] sm:$0xf]
    %v1375 = vld [vmem:[#allocation8 + $0x2a8] sm:$0xf]
    %v1376 = vld [vmem:[#allocation8 + $0x2ac] sm:$0xf]
    %v1377 = vld [vmem:[#allocation8 + $0x2b0] sm:$0xf]
    %v1378 = vld [vmem:[#allocation8 + $0x2b4] sm:$0xf]
    %v1379 = vld [vmem:[#allocation8 + $0x2b8] sm:$0xf]
    %v1380 = vld [vmem:[#allocation8 + $0x2bc] sm:$0xf]
    %v1381 = vld [vmem:[#allocation8 + $0x2c0] sm:$0xf]
    %v1382 = vld [vmem:[#allocation8 + $0x2c4] sm:$0xf]
    %v1383 = vld [vmem:[#allocation8 + $0x2c8] sm:$0xf]
    %v1384 = vld [vmem:[#allocation8 + $0x2cc] sm:$0xf]
    %v1385 = vld [vmem:[#allocation8 + $0x2d0] sm:$0xf]
    %v1386 = vld [vmem:[#allocation8 + $0x2d4] sm:$0xf]
    %v1387 = vld [vmem:[#allocation8 + $0x2d8] sm:$0xf]
    %v1388 = vld [vmem:[#allocation8 + $0x2dc] sm:$0xf]
    %v1389 = vld [vmem:[#allocation8 + $0x2e0] sm:$0xf]
    %v1390 = vld [vmem:[#allocation8 + $0x2e4] sm:$0xf]
    %v1391 = vld [vmem:[#allocation8 + $0x2e8] sm:$0xf]
    %v1392 = vld [vmem:[#allocation8 + $0x2ec] sm:$0xf]
    %v1393 = vld [vmem:[#allocation8 + $0x2f0] sm:$0xf]
    %v1394 = vld [vmem:[#allocation8 + $0x2f4] sm:$0xf]
    %v1395 = vld [vmem:[#allocation8 + $0x2f8] sm:$0xf]
    %v1396 = vld [vmem:[#allocation8 + $0x2fc] sm:$0xf]
    %v1429 = vunpack.c.l.b16 %v1365
    %v1430 = vunpack.c.l.b16 %v1366
    %v1431 = vunpack.c.l.b16 %v1367
    %v1432 = vunpack.c.l.b16 %v1368
    %v1433 = vunpack.c.l.b16 %v1369
    %v1434 = vunpack.c.l.b16 %v1370
    %v1435 = vunpack.c.l.b16 %v1371
    %v1436 = vunpack.c.l.b16 %v1372
    %v1437 = vunpack.c.l.b16 %v1373
    %v1438 = vunpack.c.l.b16 %v1374
    %v1439 = vunpack.c.l.b16 %v1375
    %v1440 = vunpack.c.l.b16 %v1376
    %v1441 = vunpack.c.l.b16 %v1377
    %v1442 = vunpack.c.l.b16 %v1378
    %v1443 = vunpack.c.l.b16 %v1379
    %v1444 = vunpack.c.l.b16 %v1380
    %v1445 = vunpack.c.l.b16 %v1381
    %v1446 = vunpack.c.l.b16 %v1382
    %v1447 = vunpack.c.l.b16 %v1383
    %v1448 = vunpack.c.l.b16 %v1384
    %v1449 = vunpack.c.l.b16 %v1385
    %v1450 = vunpack.c.l.b16 %v1386
    %v1451 = vunpack.c.l.b16 %v1387
    %v1452 = vunpack.c.l.b16 %v1388
    %v1453 = vunpack.c.l.b16 %v1389
    %v1454 = vunpack.c.l.b16 %v1390
    %v1455 = vunpack.c.l.b16 %v1391
    %v1456 = vunpack.c.l.b16 %v1392
    %v1457 = vunpack.c.l.b16 %v1393
    %v1458 = vunpack.c.l.b16 %v1394
    %v1459 = vunpack.c.l.b16 %v1395
    %v1460 = vunpack.c.l.b16 %v1396
    %v1461 = vpack.c.b16 %v1430, %v1429
    %v1462 = vpack.c.b16 %v1432, %v1431
    %v1463 = vpack.c.b16 %v1434, %v1433
    %v1464 = vpack.c.b16 %v1436, %v1435
    %v1465 = vpack.c.b16 %v1438, %v1437
    %v1466 = vpack.c.b16 %v1440, %v1439
    %v1467 = vpack.c.b16 %v1442, %v1441
    %v1468 = vpack.c.b16 %v1444, %v1443
    %v1469 = vpack.c.b16 %v1446, %v1445
    %v1470 = vpack.c.b16 %v1448, %v1447
    %v1471 = vpack.c.b16 %v1450, %v1449
    %v1472 = vpack.c.b16 %v1452, %v1451
    %v1473 = vpack.c.b16 %v1454, %v1453
    %v1474 = vpack.c.b16 %v1456, %v1455
    %v1475 = vpack.c.b16 %v1458, %v1457
    %v1476 = vpack.c.b16 %v1460, %v1459
    %1493 = vmatpush.bf16.msra.mxu0 %v1468
    %1494 = vmatpush.bf16.msra.mxu0 %v1467
    %1495 = vmatpush.bf16.msra.mxu0 %v1466
    %1496 = vmatpush.bf16.msra.mxu0 %v1465
    %1497 = vmatpush.bf16.msra.mxu0 %v1464
    %1498 = vmatpush.bf16.msra.mxu0 %v1463
    %1499 = vmatpush.bf16.msra.mxu0 %v1462
    %1500 = vmatpush.bf16.msra.mxu0 %v1461
    %1501 = vmatmul.bf16.gmra.mxu0 %v1363
    %v1502 = vpop.f32.mrf.mxu0
    %v1503 = vadd.f32 0.0, %v1502
    %v1504 = vpop.f32.mrf.mxu0
    %1505 = vdwg.mxu0
    %1506 = vmatpush.bf16.msra.mxu0 %v1476
    %1507 = vmatpush.bf16.msra.mxu0 %v1475
    %1508 = vmatpush.bf16.msra.mxu0 %v1474
    %1509 = vmatpush.bf16.msra.mxu0 %v1473
    %1510 = vmatpush.bf16.msra.mxu0 %v1472
    %1511 = vmatpush.bf16.msra.mxu0 %v1471
    %1512 = vmatpush.bf16.msra.mxu0 %v1470
    %1513 = vmatpush.bf16.msra.mxu0 %v1469
    %1514 = vmatmul.bf16.gmra.mxu0 %v1364
    %v1515 = vpop.f32.mrf.mxu0
    %v1516 = vadd.f32 %v1503, %v1515
    %v1517 = vpop.f32.mrf.mxu0
    %1518 = vdwg.mxu0
    %v1519 = vadd.f32 %v1280, %v1516
    %v1520 = vld [vmem:[%s4] sm:$0x1]
    %v1522 = vperm.slane %v1520, 0
    %v1524 = vadd.f32 %v1519, %v1522
    %1525 = vst [vmem:[#allocation10] sm:$0xff] %v1524
    // Predicated region
    $region38: #{tpu_custom_call.1} parent=1 // pred_check
      _
    $region39: #{tpu_custom_call.1} parent=1 // pred_check_branch
      %1527 = sbr.rel (0) target = $region41
    $region40: #{tpu_custom_call.1} parent=1 // pred_region
      %1529 = vsyncadd [#allocation4], 0
      %s1531 = sshll.u32 [#allocation10], 4
      %s1532 = int_to_ptr.vmem [resolvable:$true] %s1531
      %s1533 = sshll.u32 %s5, 4
      %s1534 = int_to_ptr.hbm [resolvable:$true] %s1533
      %1536 = dma.vmem_to_hbm [thread:$0]  %s1532, 128, %s1534, [#allocation4]
    $region41: #{tpu_custom_call.1} parent=1 // pred_fallthru
      _
    // Predicated region
    $region42: #{tpu_custom_call.1} parent=1 // pred_check
      _
    $region43: #{tpu_custom_call.1} parent=1 // pred_check_branch
      %1538 = sbr.rel (0) target = $region45
    $region44: #{tpu_custom_call.1} parent=1 // pred_region
      %1540 = dma.done [#allocation4], 128
    $region45: #{tpu_custom_call.1} parent=1 // pred_fallthru
      _
    %1541 = vsyncpa [#allocation3], 1
    %1542 = vsyncpa [#allocation6], 1
    %1543 = vsyncpa [#allocation9], 1
    %1544 = vsyncpa [#allocation4], 1

</llo_original>
